<compile_context>
chip_gen: v6e
topology: v6e:2x2x1
jax: 0.10.0
libtpu: 0.0.40
codegen_flags: <defaults>
</compile_context>

<pallas_src>
import jax
import jax.numpy as jnp
from jax.experimental import pallas as pl
from jax.experimental.pallas import tpu as pltpu


def _focus_conv_kernel(x_ref, w_ref, bias_ref, o_ref):
    # x_ref:    (K, T)      space-to-depth activations, lanes = HW tile
    # w_ref:    (Cout, K)   1x1 conv weight with the BN scale pre-folded
    # bias_ref: (Cout, 1)   folded BN bias  = beta - mean * gamma/sqrt(var+eps)
    # o_ref:    (Cout, T)
    acc = jnp.dot(w_ref[...], x_ref[...], preferred_element_type=jnp.float32)
    y = acc + bias_ref[...]                                   # f32 epilogue
    o_ref[...] = (y * jax.nn.sigmoid(y)).astype(o_ref.dtype)  # SiLU


def _choose_hw_tile(hw, n_batch, bytes_per_lane, target,
                    vmem_budget=20 * 1024 * 1024):
    """Pick a lane-dense tile size along the flattened Ho*Wo axis."""
    max_t = max(128, (vmem_budget // max(bytes_per_lane, 1)) // 128 * 128)
    t = max(128, min((max(target, 128) // 128) * 128, max_t))
    if hw <= t:
        # Whole extent in one block, unless that starves the v7x megacore of
        # parallel grid steps and the extent is large enough to split.
        if n_batch < 4 and hw >= 4 * 512:
            return max(512, ((hw // 4) // 128) * 128)
        return hw
    # Keep at least ~4 grid steps so both v7x TensorCores get work.
    while n_batch * pl.cdiv(hw, t) < 4 and t >= 2048:
        t = max(128, ((t // 2) // 128) * 128)
    return t


def _fused_conv_bn_silu(xf, w2d, bias, *, out_dtype, hw_tile_target):
    """xf: (N, K, HW), w2d: (Cout, K) scale-folded, bias: (Cout,) -> (N, Cout, HW)."""
    N, K, HW = xf.shape
    Cout = w2d.shape[0]

    # Double-buffered bytes per lane of the HW axis (input block + output block).
    bytes_per_lane = 2 * (K * xf.dtype.itemsize
                          + Cout * jnp.dtype(out_dtype).itemsize)
    T = _choose_hw_tile(HW, N, bytes_per_lane, hw_tile_target)

    bias2 = bias.reshape(Cout, 1).astype(jnp.float32)

    return pl.pallas_call(
        _focus_conv_kernel,
        out_shape=jax.ShapeDtypeStruct((N, Cout, HW), out_dtype),
        grid_spec=pltpu.PrefetchScalarGridSpec(
            num_scalar_prefetch=0,
            grid=(N, pl.cdiv(HW, T)),            # partial last block is masked
            in_specs=[
                pl.BlockSpec((None, K, T), lambda n, j: (n, 0, j)),
                pl.BlockSpec((Cout, K), lambda n, j: (0, 0)),   # grid-invariant
                pl.BlockSpec((Cout, 1), lambda n, j: (0, 0)),   # grid-invariant
            ],
            out_specs=pl.BlockSpec((None, Cout, T), lambda n, j: (n, 0, j)),
        ),
        compiler_params=pltpu.CompilerParams(
            dimension_semantics=("parallel", "parallel"),
            vmem_limit_bytes=32 * 1024 * 1024,   # v5e scoped default is 16 MiB
        ),
    )(xf, w2d, bias2)


def focus_forward(x_nchw, conv_w, bn_gamma, bn_beta, bn_mean, bn_var, eps=1e-5,
                  *, compute_dtype=jnp.bfloat16, out_dtype=None,
                  hw_tile_target=16384):
    """Focus.forward for ksize=1, stride=1 (YOLOX defaults).

    x_nchw : (N, Cin, H, W)        float32
    conv_w : (Cout, 4*Cin, 1, 1)   float32   (PyTorch conv weight layout)
    bn_*   : (Cout,)               float32
    returns: (N, Cout, H//2, W//2) in `out_dtype` (default: x dtype)

    compute_dtype: dtype of the MXU operands (activations/weight); bf16 by
      default -- accumulation, BN bias and SiLU stay in f32.
    out_dtype: output dtype; pass jnp.bfloat16 when the consumer accepts it to
      halve the dominant HBM write.
    """
    N, Cin, H, W = x_nchw.shape
    assert H % 2 == 0 and W % 2 == 0, (H, W)
    Cout = conv_w.shape[0]
    Ho, Wo = H // 2, W // 2
    K = 4 * Cin
    out_dtype = x_nchw.dtype if out_dtype is None else out_dtype

    # Fold BatchNorm (inference / running stats) into the conv weight + bias.
    # TODO(synk): BatchNorm uses inference (running) statistics; PyTorch
    # training-mode batch statistics are not reproduced.
    scale = (bn_gamma / jnp.sqrt(bn_var + eps)).astype(jnp.float32)
    bias = (bn_beta - bn_mean * scale).astype(jnp.float32)
    w2d = conv_w.reshape(Cout, K).astype(jnp.float32) * scale[:, None]

    if compute_dtype is not None:
        x_cast = x_nchw.astype(compute_dtype)
        w2d = w2d.astype(compute_dtype)
    else:
        x_cast = x_nchw

    # --- space-to-depth in ONE rearrangement pass (at compute_dtype width) --
    # Channel order of the result is (dw, dh, ci), i.e. exactly the
    # torch.cat((tl, bl, tr, br), dim=1) order used by Focus, so the conv
    # weight needs no permutation.  (Kept in the wrapper: an in-kernel
    # stride-2 lane de-interleave has no guaranteed-clean lowering.)
    xf = x_cast.reshape(N, Cin, Ho, 2, Wo, 2)
    xf = jnp.transpose(xf, (0, 5, 3, 1, 2, 4))          # (N, 2, 2, Cin, Ho, Wo)
    xf = xf.reshape(N, K, Ho * Wo)

    out = _fused_conv_bn_silu(xf, w2d, bias, out_dtype=out_dtype,
                              hw_tile_target=hw_tile_target)   # (N, Cout, Ho*Wo)

    # Output is already channel-major; the reshape back to NCHW is free.
    return out.reshape(N, Cout, Ho, Wo)


def _reference_forward(x_nchw, conv_w, bn_gamma, bn_beta, bn_mean, bn_var, eps=1e-5):
    """Pure-JAX reference mirroring the PyTorch module."""
    tl = x_nchw[..., 0::2, 0::2]
    tr = x_nchw[..., 0::2, 1::2]
    bl = x_nchw[..., 1::2, 0::2]
    br = x_nchw[..., 1::2, 1::2]
    xf = jnp.concatenate((tl, bl, tr, br), axis=1)
    y = jax.lax.conv_general_dilated(
        xf, conv_w, window_strides=(1, 1), padding="VALID",
        dimension_numbers=("NCHW", "OIHW", "NCHW"))
    scale = (bn_gamma / jnp.sqrt(bn_var + eps)).reshape(1, -1, 1, 1)
    bias = (bn_beta - bn_mean * bn_gamma / jnp.sqrt(bn_var + eps)).reshape(1, -1, 1, 1)
    y = y * scale + bias
    return y * jax.nn.sigmoid(y)


if __name__ == "__main__":
    root = jax.random.PRNGKey(0)
    k_x1, k_p1, k_x2, k_p2, k_x3, k_p3 = jax.random.split(root, 6)

    def make_params(key, cin, cout):
        kw, kg, kb, km, kv = jax.random.split(key, 5)
        conv_w = 0.1 * jax.random.normal(kw, (cout, 4 * cin, 1, 1), dtype=jnp.float32)
        gamma = 1.0 + 0.1 * jax.random.normal(kg, (cout,), dtype=jnp.float32)
        beta = 0.1 * jax.random.normal(kb, (cout,), dtype=jnp.float32)
        mean = 0.1 * jax.random.normal(km, (cout,), dtype=jnp.float32)
        var = jnp.abs(1.0 + 0.1 * jax.random.normal(kv, (cout,), dtype=jnp.float32))
        return conv_w, gamma, beta, mean, var

    run = jax.jit(focus_forward,
                  static_argnames=("compute_dtype", "out_dtype", "hw_tile_target"))

    # --- case 1: module-sized small shape, single block --------------------
    N, Cin, H, W, Cout = 2, 4, 16, 16, 8
    x1 = jax.random.normal(k_x1, (N, Cin, H, W), dtype=jnp.float32)
    p1 = make_params(k_p1, Cin, Cout)
    ref1 = _reference_forward(x1, *p1)

    out_f32 = jax.block_until_ready(run(x1, *p1, compute_dtype=None))
    assert out_f32.shape == (N, Cout, H // 2, W // 2), out_f32.shape
    assert jnp.allclose(out_f32, ref1, atol=1e-5, rtol=1e-5), \
        float(jnp.max(jnp.abs(out_f32 - ref1)))

    out_bf16c = jax.block_until_ready(run(x1, *p1))  # default bf16 compute, f32 out
    assert jnp.allclose(out_bf16c, ref1, atol=2e-2, rtol=2e-2), \
        float(jnp.max(jnp.abs(out_bf16c - ref1)))

    # --- case 2: multi-block tiled path + bf16 output -----------------------
    N, Cin, H, W, Cout = 1, 3, 64, 64, 32
    x2 = jax.random.normal(k_x2, (N, Cin, H, W), dtype=jnp.float32)
    p2 = make_params(k_p2, Cin, Cout)
    ref2 = _reference_forward(x2, *p2)
    out2 = jax.block_until_ready(
        run(x2, *p2, hw_tile_target=256, out_dtype=jnp.bfloat16))
    assert out2.dtype == jnp.bfloat16
    assert jnp.allclose(out2.astype(jnp.float32), ref2, atol=3e-2, rtol=3e-2), \
        float(jnp.max(jnp.abs(out2.astype(jnp.float32) - ref2)))

    # --- case 3: ragged Ho*Wo (partial last block, masked stores) -----------
    N, Cin, H, W, Cout = 1, 3, 36, 36, 16
    x3 = jax.random.normal(k_x3, (N, Cin, H, W), dtype=jnp.float32)
    p3 = make_params(k_p3, Cin, Cout)
    ref3 = _reference_forward(x3, *p3)
    out3 = jax.block_until_ready(
        run(x3, *p3, compute_dtype=None, hw_tile_target=256))
    assert jnp.allclose(out3, ref3, atol=1e-5, rtol=1e-5), \
        float(jnp.max(jnp.abs(out3 - ref3)))

    print("KERNEL_OK")
</pallas_src>

<mosaic_0001>
module attributes {stable_mosaic.version = 11 : i64} {
  func.func @_focus_conv_kernel(%arg0: i32, %arg1: i32, %arg2: memref<1x16x64xf32, #tpu.memory_space<vmem>>, %arg3: memref<8x16xf32, #tpu.memory_space<vmem>>, %arg4: memref<8x1xf32, #tpu.memory_space<vmem>>, %arg5: memref<1x8x64xf32, #tpu.memory_space<vmem>>) attributes {dimension_semantics = [#tpu.dimension_semantics<parallel>, #tpu.dimension_semantics<parallel>], iteration_bounds = array<i64: 2, 1>, scalar_prefetch = 0 : i64, scratch_operands = 0 : i64, tpu.core_type = #tpu.core_type<tc>, window_params = [{transform_indices = @transform_0, window_bounds = array<i64: 1, 16, 64>}, {pipeline_mode = #tpu.pipeline_mode<synchronous>, transform_indices = @transform_1, window_bounds = array<i64: 8, 16>}, {pipeline_mode = #tpu.pipeline_mode<synchronous>, transform_indices = @transform_2, window_bounds = array<i64: 8, 1>}, {transform_indices = @transform_3, window_bounds = array<i64: 1, 8, 64>}]} {
    %c0 = arith.constant 0 : index
    %c0_0 = arith.constant 0 : index
    %0 = vector.load %arg3[%c0, %c0_0] : memref<8x16xf32, #tpu.memory_space<vmem>>, vector<8x16xf32>
    %c0_1 = arith.constant 0 : index
    %c0_2 = arith.constant 0 : index
    %c0_3 = arith.constant 0 : index
    %1 = vector.load %arg2[%c0_1, %c0_2, %c0_3] : memref<1x16x64xf32, #tpu.memory_space<vmem>>, vector<1x16x64xf32>
    %2 = vector.shape_cast %1 : vector<1x16x64xf32> to vector<16x64xf32>
    %cst = arith.constant dense<0.000000e+00> : vector<8x64xf32>
    %3 = tpu.matmul %0, %2, %cst {dimension_numbers = #tpu.dot_dimension_numbers<[1], [0], [0], [1], [0, 0, 1, 1], [], []>} : vector<8x16xf32>, vector<16x64xf32>, vector<8x64xf32> -> vector<8x64xf32>
    %c0_4 = arith.constant 0 : index
    %c0_5 = arith.constant 0 : index
    %4 = vector.load %arg4[%c0_4, %c0_5] : memref<8x1xf32, #tpu.memory_space<vmem>>, vector<8x1xf32>
    %5 = vector.broadcast %4 : vector<8x1xf32> to vector<8x64xf32>
    %6 = arith.addf %3, %5 : vector<8x64xf32>
    %7 = arith.negf %6 : vector<8x64xf32>
    %8 = math.exp %7 : vector<8x64xf32>
    %cst_6 = arith.constant 1.000000e+00 : f32
    %9 = vector.broadcast %cst_6 : f32 to vector<8x64xf32>
    %10 = arith.addf %9, %8 : vector<8x64xf32>
    %11 = arith.divf %9, %10 : vector<8x64xf32>
    %12 = arith.mulf %6, %11 : vector<8x64xf32>
    %c0_7 = arith.constant 0 : index
    %c0_8 = arith.constant 0 : index
    %c0_9 = arith.constant 0 : index
    %13 = vector.load %arg5[%c0_7, %c0_8, %c0_9] : memref<1x8x64xf32, #tpu.memory_space<vmem>>, vector<1x8x64xf32>
    %14 = vector.shape_cast %13 : vector<1x8x64xf32> to vector<8x64xf32>
    %15 = vector.shape_cast %12 : vector<8x64xf32> to vector<1x8x64xf32>
    tpu.vector_store %arg5[%c0_7, %c0_8, %c0_9], %15 {strides = array<i32>} : memref<1x8x64xf32, #tpu.memory_space<vmem>>, vector<1x8x64xf32>,
    return
  }
  func.func @transform_0(%arg0: i32, %arg1: i32) -> (i32, i32, i32) {
    %c0_i32 = arith.constant 0 : i32
    %c0_i32_0 = arith.constant 0 : i32
    return %arg0, %c0_i32, %arg1 : i32, i32, i32
  }
  func.func @transform_1(%arg0: i32, %arg1: i32) -> (i32, i32) {
    %c0_i32 = arith.constant 0 : i32
    %c0_i32_0 = arith.constant 0 : i32
    %c0_i32_1 = arith.constant 0 : i32
    return %c0_i32, %c0_i32_0 : i32, i32
  }
  func.func @transform_2(%arg0: i32, %arg1: i32) -> (i32, i32) {
    %c0_i32 = arith.constant 0 : i32
    %c0_i32_0 = arith.constant 0 : i32
    %c0_i32_1 = arith.constant 0 : i32
    return %c0_i32, %c0_i32_0 : i32, i32
  }
  func.func @transform_3(%arg0: i32, %arg1: i32) -> (i32, i32, i32) {
    %c0_i32 = arith.constant 0 : i32
    %c0_i32_0 = arith.constant 0 : i32
    return %arg0, %c0_i32, %arg1 : i32, i32, i32
  }
}

</mosaic_0001>

<llo_original>
// kernel: focus_forward.1
$region0: #{focus_forward.1}
  #allocation0 [shape = 'u32[]', space=smem, size = 0x4, offset = 0x4, fixed_abs, tag = 'smem constant byte address 0x4 - core index']
  #allocation1 [shape = 'u32[144,128]{1,0:T(1,128)}', space=vmem, size = 0x12000, scoped, tag = 'internal scratch']
  %s0 = inlined_call_operand.vmem [shape: f32[2,16,64], index: 0, kind: input, shape index: {}]
  %s1 = inlined_call_operand.vmem [shape: f32[8,16], index: 1, kind: input, shape index: {}]
  %s2 = inlined_call_operand.vmem [shape: f32[8,1], index: 2, kind: input, shape index: {}]
  %s3 = inlined_call_operand.vmem [shape: f32[2,8,64], index: 3, kind: output, shape index: {}]
  %s4 = sld [smem:[#allocation0]]
  $region45: #{focus_forward.1} parent=0
    _
  %s6 = ssub.s32 1, %s4
  %s7 = scalar_select 0, %s6, %s4
  loop: start=0, step=1, limit=4
  $region2: #{focus_forward.1} parent=0 // loop_pre_header
    _
  $region3: #{focus_forward.1} parent=0 // loop_header
    %s9 = sphi 0, %s13
    %p10 = scmp.ge.s32.totalorder %s9, 4
    %s16 = sphi 0, %s28
    %s17 = sphi 0, %s24
    %s18 = sphi 0, %s16
    %s19 = sphi 0, %s17
    %s20 = sphi 0, %s18
    %s21 = sphi 0, %s19
    %s33 = sphi 0, %s35
    %s36 = sphi 0, %s33
    %s37 = sphi 0, %s36
    %s53 = sphi 0, %s37
    %s57 = sphi 0, %s57
    %s59 = sphi 0, %s57
    %s60 = sphi 0, %s59
    %s74 = sphi 0, %s60
    %s78 = sphi 0, %s78
    %s80 = sphi 0, %s78
    %s81 = sphi 0, %s80
    %s95 = sphi 0, %s81
    %s103 = sphi 0, %s105
    %s106 = sphi 0, %s103
    %s107 = sphi 0, %s106
    %s123 = sphi 0, %s107
  $region4: #{focus_forward.1} parent=0 // loop_header_branch
    %12 = sbr.rel (%p10) target = $region8
  $region5: #{focus_forward.1} parent=0 // loop_body
    %s14 = ssub.s32 %s9, 1
    %s15 = ssub.s32 %s9, 2
    %s22 = sadd.s32 1, %s17
    %p23 = scmp.ge.s32.totalorder %s22, 1
    %s24 = scalar_select %p23, 0, %s22
    %s25 = sadd.s32 1, %s16
    %s26 = scalar_select %p23, %s25, %s16
    %p27 = scmp.ge.s32.totalorder %s26, 2
    %s28 = scalar_select %p27, 0, %s26
    %s29 = ssub.s32 %s16, %s28
    %s30 = ssub.s32 %s17, %s24
    %s31 = sor.u32 %s29, %s30
    %p32 = scmp.eq.s32.totalorder %s31, 0
    %s34 = sadd.s32 %s33, 1
    %s35 = scalar_select %p32, %s33, %s34
    %p38 = pneg %p32
    %p39 = scmp.eq.s32.totalorder %s9, 1
    %p40 = por %p38, %p39
    %p41 = scmp.ne.s32.totalorder %s33, %s36
    %p42 = scmp.eq.s32.totalorder %s9, 0
    %p43 = por %p41, %p42
    %p44 = scmp.ne.s32.totalorder %s33, %s36
    %p45 = scmp.eq.s32.totalorder %s14, 1
    %p46 = por %p44, %p45
    %p47 = scmp.ne.s32.totalorder %s36, %s37
    %p48 = scmp.eq.s32.totalorder %s14, 0
    %p49 = por %p47, %p48
    %p50 = scmp.ne.s32.totalorder %s36, %s37
    %p51 = scmp.eq.s32.totalorder %s15, 1
    %p52 = por %p50, %p51
    %p54 = scmp.ne.s32.totalorder %s37, %s53
    %p55 = scmp.eq.s32.totalorder %s15, 0
    %p56 = por %p54, %p55
    %s58 = sadd.s32 %s57, 1
    %p61 = scmp.eq.s32.totalorder %s9, 1
    %p62 = scmp.ne.s32.totalorder %s57, %s59
    %p63 = scmp.eq.s32.totalorder %s9, 0
    %p64 = por %p62, %p63
    %p65 = scmp.ne.s32.totalorder %s57, %s59
    %p66 = scmp.eq.s32.totalorder %s14, 1
    %p67 = por %p65, %p66
    %p68 = scmp.ne.s32.totalorder %s59, %s60
    %p69 = scmp.eq.s32.totalorder %s14, 0
    %p70 = por %p68, %p69
    %p71 = scmp.ne.s32.totalorder %s59, %s60
    %p72 = scmp.eq.s32.totalorder %s15, 1
    %p73 = por %p71, %p72
    %p75 = scmp.ne.s32.totalorder %s60, %s74
    %p76 = scmp.eq.s32.totalorder %s15, 0
    %p77 = por %p75, %p76
    %s79 = sadd.s32 %s78, 1
    %p82 = scmp.eq.s32.totalorder %s9, 1
    %p83 = scmp.ne.s32.totalorder %s78, %s80
    %p84 = scmp.eq.s32.totalorder %s9, 0
    %p85 = por %p83, %p84
    %p86 = scmp.ne.s32.totalorder %s78, %s80
    %p87 = scmp.eq.s32.totalorder %s14, 1
    %p88 = por %p86, %p87
    %p89 = scmp.ne.s32.totalorder %s80, %s81
    %p90 = scmp.eq.s32.totalorder %s14, 0
    %p91 = por %p89, %p90
    %p92 = scmp.ne.s32.totalorder %s80, %s81
    %p93 = scmp.eq.s32.totalorder %s15, 1
    %p94 = por %p92, %p93
    %p96 = scmp.ne.s32.totalorder %s81, %s95
    %p97 = scmp.eq.s32.totalorder %s15, 0
    %p98 = por %p96, %p97
    %s99 = ssub.s32 %s16, %s28
    %s100 = ssub.s32 %s17, %s24
    %s101 = sor.u32 %s99, %s100
    %p102 = scmp.eq.s32.totalorder %s101, 0
    %s104 = sadd.s32 %s103, 1
    %s105 = scalar_select %p102, %s103, %s104
    %p108 = pneg %p102
    %p109 = scmp.eq.s32.totalorder %s9, 1
    %p110 = por %p108, %p109
    %p111 = scmp.ne.s32.totalorder %s103, %s106
    %p112 = scmp.eq.s32.totalorder %s9, 0
    %p113 = por %p111, %p112
    %p114 = scmp.ne.s32.totalorder %s103, %s106
    %p115 = scmp.eq.s32.totalorder %s14, 1
    %p116 = por %p114, %p115
    %p117 = scmp.ne.s32.totalorder %s106, %s107
    %p118 = scmp.eq.s32.totalorder %s14, 0
    %p119 = por %p117, %p118
    %p120 = scmp.ne.s32.totalorder %s106, %s107
    %p121 = scmp.eq.s32.totalorder %s15, 1
    %p122 = por %p120, %p121
    %p124 = scmp.ne.s32.totalorder %s107, %s123
    %p125 = scmp.eq.s32.totalorder %s15, 0
    %p126 = por %p124, %p125
    %p127 = scmp.le.s32.totalorder 1, %s9
    %p128 = scmp.lt.s32.totalorder %s9, 3
    %p129 = pnand %p127, %p128
    %p130 = pneg %p129
    // Predicated region
    $region9: #{focus_forward.1} parent=5 // pred_check
      _
    $region10: #{focus_forward.1} parent=5 // pred_check_branch
      %132 = sbr.rel (%p129) target = $region12
    $region11: #{focus_forward.1} parent=5 // pred_region
      %s133 = ssub.s32 %s9, 1
      // Predicated region
      $region13: #{focus_forward.1} parent=11 // pred_check
        %p134 = pneg %p70
      $region14: #{focus_forward.1} parent=11 // pred_check_branch
        %136 = sbr.rel (%p134) target = $region16
      $region15: #{focus_forward.1} parent=11 // pred_region
        _
      $region16: #{focus_forward.1} parent=11 // pred_fallthru
        _
      // Predicated region
      $region17: #{focus_forward.1} parent=11 // pred_check
        %p137 = pneg %p91
      $region18: #{focus_forward.1} parent=11 // pred_check_branch
        %139 = sbr.rel (%p137) target = $region20
      $region19: #{focus_forward.1} parent=11 // pred_region
        _
      $region20: #{focus_forward.1} parent=11 // pred_fallthru
        _
    $region12: #{focus_forward.1} parent=5 // pred_fallthru
      _
    %p140 = scmp.lt.s32.totalorder %s9, 2
    // Predicated region
    $region21: #{focus_forward.1} parent=5 // pred_check
      %p141 = pneg %p140
    $region22: #{focus_forward.1} parent=5 // pred_check_branch
      %143 = sbr.rel (%p141) target = $region24
    $region23: #{focus_forward.1} parent=5 // pred_region
      // Predicated region
      $region25: #{focus_forward.1} parent=23 // pred_check
        %p144 = pneg %p43
      $region26: #{focus_forward.1} parent=23 // pred_check_branch
        %146 = sbr.rel (%p144) target = $region28
      $region27: #{focus_forward.1} parent=23 // pred_region
        %p147 = scmp.lt.s32.totalorder %s16, 1
        %s148 = scalar_select %p147, %s16, 1
        %p149 = scmp.lt.s32.totalorder %s17, 0
        %s150 = scalar_select %p149, %s17, 0
        %s151 = smul.addr %s148, 2
        %s152 = sadd.s32 %s150, %s151
        %s153 = smul.addr %s152, 8
        %s154 = scalar_lea.vmem %s0, %s153
      $region28: #{focus_forward.1} parent=23 // pred_fallthru
        _
    $region24: #{focus_forward.1} parent=5 // pred_fallthru
      _
    %p155 = scmp.le.s32.totalorder 1, %s9
    %p156 = scmp.lt.s32.totalorder %s9, 3
    %p157 = pnand %p155, %p156
    %p158 = pneg %p157
    // Predicated region
    $region29: #{focus_forward.1} parent=5 // pred_check
      _
    $region30: #{focus_forward.1} parent=5 // pred_check_branch
      %160 = sbr.rel (%p157) target = $region32
    $region31: #{focus_forward.1} parent=5 // pred_region
      %s161 = ssub.s32 %s9, 1
      %p162 = scmp.lt.s32.totalorder %s18, 1
      %s163 = scalar_select %p162, %s18, 1
      %p164 = scmp.lt.s32.totalorder %s19, 0
      %s165 = scalar_select %p164, %s19, 0
      %s166 = smul.addr %s163, 2
      %s167 = sadd.s32 %s165, %s166
      %s168 = smul.addr %s167, 8
      %s169 = scalar_lea.vmem %s0, %s168
      %p170 = pneg %p49
      %p171 = pneg %p46
      %p172 = pneg %p70
      %p173 = pneg %p67
      %p174 = pneg %p91
      %p175 = pneg %p88
      %p176 = pneg %p119
      %p177 = pneg %p116
      %p178 = scmp.lt.s32.totalorder %s18, 1
      %s179 = scalar_select %p178, %s18, 1
      %p180 = scmp.lt.s32.totalorder %s19, 0
      %s181 = scalar_select %p180, %s19, 0
      %s182 = sadd.s32 %s181, %s179
      %s183 = smul.addr %s182, 8
      %s184 = scalar_lea.vmem %s3, %s183
      %p185 = scmp.lt.s32.totalorder %s18, 1
      %s186 = scalar_select %p185, %s18, 1
      %p187 = scmp.lt.s32.totalorder %s19, 0
      %s188 = scalar_select %p187, %s19, 0
      %s189 = smul.addr %s186, 2
      %s190 = sadd.s32 %s188, %s189
      %s191 = smul.addr %s190, 8
      %s192 = scalar_lea.vmem %s0, %s191
      %p193 = scmp.lt.s32.totalorder %s18, 1
      %s194 = scalar_select %p193, %s18, 1
      %p195 = scmp.lt.s32.totalorder %s19, 0
      %s196 = scalar_select %p195, %s19, 0
      %s197 = sadd.s32 %s196, %s194
      %s198 = smul.addr %s197, 8
      %s199 = scalar_lea.vmem %s3, %s198
      %v200 = vld [vmem:[%s1] sm:$0xff]
      %v201 = vld [vmem:[%s192] sm:$0xff]
      %v202 = vld [vmem:[%s192 + $0x8] sm:$0xff]
      %v203 = vld [vmem:[%s2] sm:$0xff]
      %205 = vset.pattern.permute.xlu0 0
      %206 = vperm.xlu0 %205, %v203
      %v207 = vpop.permute.xlu0 %206
      %vm209 = vcmask 130048
      %v211 = vsel %vm209, %v200, 0
      %213 = vmatprep.subr.mxu0 0.0
      %214 = vmatpush1.msra.mxu0 0.0
      %215 = vmatprep.subr.mxu0 0.0
      %216 = vmatpush1.msra.mxu0 0.0
      %217 = vmatprep.subr.mxu0 0.0
      %218 = vmatpush1.msra.mxu0 0.0
      %219 = vmatprep.subr.mxu0 0.0
      %220 = vmatpush1.msra.mxu0 0.0
      %221 = vmatprep.subr.mxu0 0.0
      %222 = vmatpush1.msra.mxu0 0.0
      %223 = vmatprep.subr.mxu0 0.0
      %224 = vmatpush1.msra.mxu0 0.0
      %225 = vmatprep.subr.mxu0 0.0
      %226 = vmatpush1.msra.mxu0 0.0
      %227 = vmatprep.subr.mxu0 0.0
      %228 = vmatpush1.msra.mxu0 0.0
      %229 = vmatprep.subr.mxu0 0.0
      %230 = vmatpush1.msra.mxu0 0.0
      %231 = vmatprep.subr.mxu0 0.0
      %232 = vmatpush1.msra.mxu0 0.0
      %233 = vmatprep.subr.mxu0 0.0
      %234 = vmatpush1.msra.mxu0 0.0
      %235 = vmatprep.subr.mxu0 0.0
      %236 = vmatpush1.msra.mxu0 0.0
      %237 = vmatprep.subr.mxu0 0.0
      %238 = vmatpush1.msra.mxu0 0.0
      %239 = vmatprep.subr.mxu0 0.0
      %240 = vmatpush1.msra.mxu0 0.0
      %241 = vmatprep.subr.mxu0 0.0
      %242 = vmatpush1.msra.mxu0 %v202
      %243 = vmatprep.subr.mxu0 0.0
      %244 = vmatpush1.msra.mxu0 %v201
      %245 = vmatprep.subr.mxu0 0.0
      %246 = vmatpush2.msra.mxu0 0.0
      %247 = vmatprep.subr.mxu0 0.0
      %248 = vmatpush2.msra.mxu0 0.0
      %249 = vmatprep.subr.mxu0 0.0
      %250 = vmatpush2.msra.mxu0 0.0
      %251 = vmatprep.subr.mxu0 0.0
      %252 = vmatpush2.msra.mxu0 0.0
      %253 = vmatprep.subr.mxu0 0.0
      %254 = vmatpush2.msra.mxu0 0.0
      %255 = vmatprep.subr.mxu0 0.0
      %256 = vmatpush2.msra.mxu0 0.0
      %257 = vmatprep.subr.mxu0 0.0
      %258 = vmatpush2.msra.mxu0 0.0
      %259 = vmatprep.subr.mxu0 0.0
      %260 = vmatpush2.msra.mxu0 0.0
      %261 = vmatprep.subr.mxu0 0.0
      %262 = vmatpush2.msra.mxu0 0.0
      %263 = vmatprep.subr.mxu0 0.0
      %264 = vmatpush2.msra.mxu0 0.0
      %265 = vmatprep.subr.mxu0 0.0
      %266 = vmatpush2.msra.mxu0 0.0
      %267 = vmatprep.subr.mxu0 0.0
      %268 = vmatpush2.msra.mxu0 0.0
      %269 = vmatprep.subr.mxu0 0.0
      %270 = vmatpush2.msra.mxu0 0.0
      %271 = vmatprep.subr.mxu0 0.0
      %272 = vmatpush2.msra.mxu0 0.0
      %273 = vmatprep.subr.mxu0 0.0
      %274 = vmatpush2.msra.mxu0 0.0
      %275 = vmatprep.subr.mxu0 0.0
      %276 = vmatpush2.msra.mxu0 0.0
      %277 = vmatprep.mubr.f32.mxu0 0.0
      %278 = vmatmul.mubr.f32.gmra.mxu0 %v211
      %v279 = vpop.f32.mrf.mxu0
      %v280 = vadd.f32 %v207, %v279
      %v281 = vpop.f32.mrf.mxu0
      %282 = vdwg.mxu0
      %v283 = vxor.u32 %v280, 2147483648
      %v284 = vmul.f32 %v283, 1.442695
      %v285 = vpow.pop %v284
      %v286 = vadd.f32 %v285, 1.0
      %v287 = vrcp.pop %v286
      %v288 = vmul.f32 1.0, %v287
      %v289 = vmul.f32 %v280, %v288
      %vm290 = vcmask 523264
      %291 = vst.msk [vmem:[%s199] sm:$0xff] %vm290, %v289
      %p292 = scmp.lt.s32.totalorder %s18, 1
      %s293 = scalar_select %p292, %s18, 1
      %p294 = scmp.lt.s32.totalorder %s19, 0
      %s295 = scalar_select %p294, %s19, 0
      %s296 = sadd.s32 %s295, %s293
      %s297 = smul.addr %s296, 8
      %s298 = scalar_lea.vmem %s3, %s297
      // Predicated region
      $region33: #{focus_forward.1} parent=31 // pred_check
        %p299 = pneg %p116
      $region34: #{focus_forward.1} parent=31 // pred_check_branch
        %301 = sbr.rel (%p299) target = $region36
      $region35: #{focus_forward.1} parent=31 // pred_region
        _
      $region36: #{focus_forward.1} parent=31 // pred_fallthru
        _
    $region32: #{focus_forward.1} parent=5 // pred_fallthru
      _
    %p302 = scmp.le.s32.totalorder 2, %s9
    // Predicated region
    $region37: #{focus_forward.1} parent=5 // pred_check
      %p303 = pneg %p302
    $region38: #{focus_forward.1} parent=5 // pred_check_branch
      %305 = sbr.rel (%p303) target = $region40
    $region39: #{focus_forward.1} parent=5 // pred_region
      %s306 = ssub.s32 %s9, 2
      // Predicated region
      $region41: #{focus_forward.1} parent=39 // pred_check
        %p307 = pneg %p122
      $region42: #{focus_forward.1} parent=39 // pred_check_branch
        %309 = sbr.rel (%p307) target = $region44
      $region43: #{focus_forward.1} parent=39 // pred_region
        %p310 = scmp.lt.s32.totalorder %s20, 1
        %s311 = scalar_select %p310, %s20, 1
        %p312 = scmp.lt.s32.totalorder %s21, 0
        %s313 = scalar_select %p312, %s21, 0
        %s314 = sadd.s32 %s313, %s311
        %s315 = smul.addr %s314, 8
        %s316 = scalar_lea.vmem %s3, %s315
      $region44: #{focus_forward.1} parent=39 // pred_fallthru
        _
    $region40: #{focus_forward.1} parent=5 // pred_fallthru
      _
  $region6: #{focus_forward.1} parent=0 // loop_footer
    %s13 = sadd.s32 1, %s9
  $region7: #{focus_forward.1} parent=0 // loop_footer_branch
    %8 = sbr.rel target = $region3
  $region8: #{focus_forward.1} parent=0 // loop_exit
    _

</llo_original>
